<compile_context>
chip_gen: v7x
topology: tpu7x:2x2x1
jax: 0.10.0
libtpu: 0.0.40
codegen_flags: <defaults>
</compile_context>

<pallas_src>
import functools

import jax
import jax.numpy as jnp
import numpy as np
from jax.experimental import pallas as pl
from jax.experimental.pallas import tpu as pltpu


_TILE_M_MAX = 4096   # rows per grid step (mem-bound; big tiles amortize step overhead)
_LANE = 128
_SUBLANE = 8


def _round_up(x, m):
    return ((x + m - 1) // m) * m


def _lane_gather(x, delta, d_pad):
    """out[..., j] = x[..., (j + delta) % d_pad]  (static lane rotation, XLU slot)."""
    shift = (d_pad - delta) % d_pad
    if shift == 0:
        return x
    return pltpu.roll(x, shift=shift, axis=x.ndim - 1)


def _combine_symbols_kernel(x_ref, o_ref, *, d_pad, sym1, sym2, w_pos,
                            pos2, pos3, scr1, scr2):
    # x_ref / o_ref: (TILE_M, d_pad) VMEM tiles.  All slice offsets are static
    # Python ints, so the body is full-width VPU selects + XLU lane rotations:
    # no weight matrix, no MXU, lane-dense unmasked stores.
    x = x_ref[...].astype(jnp.float32)
    col = jax.lax.broadcasted_iota(jnp.int32, x.shape, dimension=x.ndim - 1)

    # Identity-kept columns: [0, sym2) plus the untouched tail [pos2+w_pos, pos3).
    keep = col < sym2
    if pos2 + w_pos < pos3:
        keep = keep | ((col >= pos2 + w_pos) & (col < pos3))
    y = jnp.where(keep, x, 0.0)

    nsym = sym2 - sym1
    if nsym > 0:
        # Symbol rows additionally gather the two scratch sections.
        sym_mask = (col >= sym1) & (col < sym2)
        gathered = (_lane_gather(x, scr1 - sym1, d_pad)
                    + _lane_gather(x, scr2 - sym1, d_pad))
        y = y + jnp.where(sym_mask, gathered, 0.0)

    if w_pos > 0:
        # pos2 rows are copied from pos3 (their own identity is dropped).
        pos_mask = (col >= pos2) & (col < pos2 + w_pos)
        y = y + jnp.where(pos_mask, _lane_gather(x, pos3 - pos2, d_pad), 0.0)

    o_ref[...] = y.astype(o_ref.dtype)


def _validate_slices(slices):
    (d_in, w_pos, st_, sym1_, sym2_, pos1_, pos2_, pos3_,
     scr1_, scr2_, scr3_, scr4_, scr5_) = slices
    nsym = sym2_ - sym1_
    assert 0 <= st_ <= sym1_ <= sym2_ <= pos1_ <= pos2_ <= pos3_ <= scr1_ <= d_in
    assert w_pos >= 0 and nsym >= 0
    assert pos2_ + w_pos <= pos3_
    assert pos3_ + w_pos <= d_in
    assert scr1_ + nsym <= d_in and scr2_ + nsym <= d_in
    return slices


def combine_symbols(x, slices):
    """CombineSymbols forward: y = x @ W^T with the fixed 0/1 W from `slices`.

    No weight tensor is materialized; the structure is applied directly.
    """
    (d_in, w_pos, st_, sym1_, sym2_, pos1_, pos2_, pos3_,
     scr1_, scr2_, scr3_, scr4_, scr5_) = _validate_slices(slices)
    assert x.shape[-1] == d_in

    lead = x.shape[:-1]
    m = int(np.prod(lead)) if lead else 1
    x2d = x.reshape(m, d_in)

    # Keep output stores lane-dense: pad the feature dim to a multiple of 128.
    d_pad = max(_LANE, _round_up(d_in, _LANE))
    if d_pad != d_in:
        x2d = jnp.pad(x2d, ((0, 0), (0, d_pad - d_in)))

    # Row tile: as big as possible (mem-bound, ~0.35 us fixed cost per grid
    # step), capped at _TILE_M_MAX, and kept to >= 2 grid steps when there is
    # enough work so the "parallel" axis can shard across the 2 TCs on v7x.
    tile_m = min(_TILE_M_MAX, _round_up(m, _SUBLANE))
    if m > _SUBLANE:
        tile_m = min(tile_m, _round_up((m + 1) // 2, _SUBLANE))
    grid = (pl.cdiv(m, tile_m),)

    itemsize = jnp.dtype(x.dtype).itemsize
    io_bytes = 2 * 2 * tile_m * d_pad * itemsize   # in + out, double-buffered
    tmp_bytes = 4 * tile_m * d_pad * 4             # f32 roll / select temporaries
    vmem_limit = int(min(48 * 1024 * 1024,
                         max(2 * (io_bytes + tmp_bytes), 8 * 1024 * 1024)))

    kernel = functools.partial(
        _combine_symbols_kernel,
        d_pad=d_pad, sym1=sym1_, sym2=sym2_, w_pos=w_pos,
        pos2=pos2_, pos3=pos3_, scr1=scr1_, scr2=scr2_)

    out = pl.pallas_call(
        kernel,
        out_shape=jax.ShapeDtypeStruct((m, d_pad), x.dtype),
        grid=grid,
        in_specs=[pl.BlockSpec((tile_m, d_pad), lambda i: (i, 0))],
        out_specs=pl.BlockSpec((tile_m, d_pad), lambda i: (i, 0)),
        compiler_params=pltpu.CompilerParams(
            dimension_semantics=("parallel",),   # shard rows across TCs on v7x
            vmem_limit_bytes=vmem_limit,
        ),
    )(x2d)

    if d_pad != d_in:
        out = out[:, :d_in]
    return out.reshape(*lead, d_in)


def make_combine_symbols_weight(slices):
    """Dense 0/1 weight W exactly as CombineSymbols.__init__ builds it.

    Reference / testing only — the kernel never materializes it.
    """
    (d_in, w_pos, st_, sym1_, sym2_, pos1_, pos2_, pos3_,
     scr1_, scr2_, scr3_, scr4_, scr5_) = slices
    w = np.eye(d_in, dtype=np.float32)
    for k in range(sym2_ - sym1_):
        w[sym1_ + k, scr1_ + k] = 1.0
        w[sym1_ + k, scr2_ + k] = 1.0
    for k in range(w_pos):
        w[pos2_ + k, pos3_ + k] = 1.0
        w[pos2_ + k, pos2_ + k] = 0.0
    w[sym2_:pos1_] = 0.0
    w[pos1_:pos2_] = 0.0
    w[pos3_:scr1_] = 0.0
    w[scr1_:] = 0.0
    return w


if __name__ == "__main__":
    # slices = (d_in, w_pos, st_, sym1_, sym2_, pos1_, pos2_, pos3_,
    #           scr1_, scr2_, scr3_, scr4_, scr5_)
    slices = (128, 8, 0, 8, 24, 24, 32, 40, 48, 64, 80, 96, 112)
    d_in, w_pos = slices[0], slices[1]
    sym1_, sym2_ = slices[3], slices[4]
    pos2_, pos3_ = slices[6], slices[7]
    scr1_, scr2_ = slices[8], slices[9]

    batch, seq = 2, 8
    key = jax.random.PRNGKey(0)
    tgt = jax.random.normal(key, (batch, seq, d_in), dtype=jnp.float32)

    out = combine_symbols(tgt, slices)
    out = jax.block_until_ready(out)
    assert out.shape == (batch, seq, d_in)

    # Reference semantics: y = tgt @ W^T (Linear with bias=False).
    w = make_combine_symbols_weight(slices)
    tgt_np = np.asarray(tgt)
    out_np = np.asarray(out)
    ref = tgt_np @ w.T
    np.testing.assert_allclose(out_np, ref, rtol=1e-5, atol=1e-5)

    # Structural checks from the WCM construction.
    nsym = sym2_ - sym1_
    np.testing.assert_allclose(out_np[..., :sym1_], tgt_np[..., :sym1_],
                               rtol=1e-6, atol=1e-6)
    np.testing.assert_allclose(
        out_np[..., sym1_:sym2_],
        tgt_np[..., sym1_:sym2_]
        + tgt_np[..., scr1_:scr1_ + nsym]
        + tgt_np[..., scr2_:scr2_ + nsym],
        rtol=1e-5, atol=1e-5)
    np.testing.assert_allclose(out_np[..., sym2_:pos2_], 0.0, atol=1e-6)
    np.testing.assert_allclose(out_np[..., pos2_:pos2_ + w_pos],
                               tgt_np[..., pos3_:pos3_ + w_pos],
                               rtol=1e-6, atol=1e-6)
    np.testing.assert_allclose(out_np[..., pos3_:], 0.0, atol=1e-6)

    print("KERNEL_OK")
</pallas_src>

<mosaic_0001>
module attributes {stable_mosaic.version = 11 : i64} {
  func.func @_combine_symbols_kernel(%arg0: i32, %arg1: memref<8x128xf32, #tpu.memory_space<vmem>>, %arg2: memref<8x128xf32, #tpu.memory_space<vmem>>) attributes {dimension_semantics = [#tpu.dimension_semantics<parallel>], iteration_bounds = array<i64: 2>, scalar_prefetch = 0 : i64, scratch_operands = 0 : i64, tpu.core_type = #tpu.core_type<tc>, window_params = [{transform_indices = @transform_0, window_bounds = array<i64: 8, 128>}, {transform_indices = @transform_1, window_bounds = array<i64: 8, 128>}]} {
    %c0 = arith.constant 0 : index
    %c0_0 = arith.constant 0 : index
    %0 = vector.load %arg1[%c0, %c0_0] : memref<8x128xf32, #tpu.memory_space<vmem>>, vector<8x128xf32>
    %1 = tpu.iota {dimensions = array<i32: 1>} : vector<8x128xi32>
    %c24_i32 = arith.constant 24 : i32
    %2 = vector.broadcast %c24_i32 : i32 to vector<8x128xi32>
    %3 = arith.cmpi slt, %1, %2 : vector<8x128xi32>
    %cst = arith.constant 0.000000e+00 : f32
    %4 = vector.broadcast %cst : f32 to vector<8x128xf32>
    %5 = arith.select %3, %0, %4 : vector<8x128xi1>, vector<8x128xf32>
    %c8_i32 = arith.constant 8 : i32
    %6 = vector.broadcast %c8_i32 : i32 to vector<8x128xi32>
    %7 = arith.cmpi sge, %1, %6 : vector<8x128xi32>
    %c24_i32_1 = arith.constant 24 : i32
    %8 = vector.broadcast %c24_i32_1 : i32 to vector<8x128xi32>
    %9 = arith.cmpi slt, %1, %8 : vector<8x128xi32>
    %10 = arith.andi %7, %9 : vector<8x128xi1>
    %c88_i32 = arith.constant 88 : i32
    %11 = tpu.dynamic_rotate %0 by %c88_i32 dim 1 : vector<8x128xf32>, i32 -> vector<8x128xf32>
    %c72_i32 = arith.constant 72 : i32
    %12 = tpu.dynamic_rotate %0 by %c72_i32 dim 1 : vector<8x128xf32>, i32 -> vector<8x128xf32>
    %13 = arith.addf %11, %12 : vector<8x128xf32>
    %cst_2 = arith.constant 0.000000e+00 : f32
    %14 = vector.broadcast %cst_2 : f32 to vector<8x128xf32>
    %15 = arith.select %10, %13, %14 : vector<8x128xi1>, vector<8x128xf32>
    %16 = arith.addf %5, %15 : vector<8x128xf32>
    %c32_i32 = arith.constant 32 : i32
    %17 = vector.broadcast %c32_i32 : i32 to vector<8x128xi32>
    %18 = arith.cmpi sge, %1, %17 : vector<8x128xi32>
    %c40_i32 = arith.constant 40 : i32
    %19 = vector.broadcast %c40_i32 : i32 to vector<8x128xi32>
    %20 = arith.cmpi slt, %1, %19 : vector<8x128xi32>
    %21 = arith.andi %18, %20 : vector<8x128xi1>
    %c120_i32 = arith.constant 120 : i32
    %22 = tpu.dynamic_rotate %0 by %c120_i32 dim 1 : vector<8x128xf32>, i32 -> vector<8x128xf32>
    %cst_3 = arith.constant 0.000000e+00 : f32
    %23 = vector.broadcast %cst_3 : f32 to vector<8x128xf32>
    %24 = arith.select %21, %22, %23 : vector<8x128xi1>, vector<8x128xf32>
    %25 = arith.addf %16, %24 : vector<8x128xf32>
    %c0_4 = arith.constant 0 : index
    %c0_5 = arith.constant 0 : index
    %26 = vector.load %arg2[%c0_4, %c0_5] : memref<8x128xf32, #tpu.memory_space<vmem>>, vector<8x128xf32>
    tpu.vector_store %arg2[%c0_4, %c0_5], %25 {strides = array<i32>} : memref<8x128xf32, #tpu.memory_space<vmem>>, vector<8x128xf32>,
    return
  }
  func.func @transform_0(%arg0: i32) -> (i32, i32) {
    %c0_i32 = arith.constant 0 : i32
    %c0_i32_0 = arith.constant 0 : i32
    return %arg0, %c0_i32 : i32, i32
  }
  func.func @transform_1(%arg0: i32) -> (i32, i32) {
    %c0_i32 = arith.constant 0 : i32
    %c0_i32_0 = arith.constant 0 : i32
    return %arg0, %c0_i32 : i32, i32
  }
}

</mosaic_0001>

<llo_original>
// kernel: tpu_custom_call.1
$region0: #{tpu_custom_call.1}
  #allocation0 [shape = 'u32[]', space=smem, size = 0x4, offset = 0x4, fixed_abs, tag = 'smem constant byte address 0x4 - core index']
  #allocation1 [shape = 'u32[144,128]{1,0:T(1,128)}', space=vmem, size = 0x12000, scoped, tag = 'internal scratch']
  %s0 = inlined_call_operand.hbm [shape: f32[16,128], index: 0, kind: input, shape index: {}]
  %s1 = inlined_call_operand.hbm [shape: f32[16,128], index: 1, kind: output, shape index: {}]
  %s2 = sld [smem:[#allocation0]]
  $region41: #{tpu_custom_call.1} parent=0
    _
  %s4 = ssub.s32 1, %s2
  %s5 = scalar_select 0, %s4, %s2
  $region1: #{tpu_custom_call.1} parent=0
    #allocation2 [shape = 'u8[8192]{0}', space=vmem, size = 0x2000, scoped, tag = 'input window, operand 0']
    #allocation3 [shape = 's32[2]{0}', space=sflag, size = 0x8, scoped, tag = 'scoped memory for tpu_custom_call.1']
    #allocation4 [shape = 's32[2]{0}', space=sflag, size = 0x8, scoped, tag = 'scoped memory for tpu_custom_call.1']
    #allocation5 [shape = 'u8[8192]{0}', space=vmem, size = 0x2000, scoped, tag = 'output window, operand 0']
    %6 = vsyncpa [#allocation3], 0
    %s7 = scalar_lea.sflag [#allocation3], 1
    %8 = vsyncpa %s7, 0
    %9 = vsyncpa [#allocation4], 0
    %s10 = scalar_lea.sflag [#allocation4], 1
    %11 = vsyncpa %s10, 0
    loop: start=0, step=1, limit=4
    $region2: #{tpu_custom_call.1} parent=1 // loop_pre_header
      _
    $region3: #{tpu_custom_call.1} parent=1 // loop_header
      %s13 = sphi 0, %s17
      %p14 = scmp.ge.s32.totalorder %s13, 4
      %s23 = sphi 0, %s25
      %s26 = sphi 0, %s23
      %s27 = sphi 0, %s26
      %s43 = sphi 0, %s27
      %s49 = sphi 0, %s51
      %s52 = sphi 0, %s49
      %s53 = sphi 0, %s52
      %s69 = sphi 0, %s53
    $region4: #{tpu_custom_call.1} parent=1 // loop_header_branch
      %16 = sbr.rel (%p14) target = $region8
    $region5: #{tpu_custom_call.1} parent=1 // loop_body
      %s18 = ssub.s32 %s13, 1
      %s19 = ssub.s32 %s13, 2
      %s20 = sadd.s32 %s13, 1
      %s21 = ssub.s32 %s13, %s20
      %p22 = scmp.eq.s32.totalorder %s21, 0
      %s24 = sadd.s32 %s23, 1
      %s25 = scalar_select %p22, %s23, %s24
      %p28 = pneg %p22
      %p29 = scmp.eq.s32.totalorder %s13, 1
      %p30 = por %p28, %p29
      %p31 = scmp.ne.s32.totalorder %s23, %s26
      %p32 = scmp.eq.s32.totalorder %s13, 0
      %p33 = por %p31, %p32
      %p34 = scmp.ne.s32.totalorder %s23, %s26
      %p35 = scmp.eq.s32.totalorder %s18, 1
      %p36 = por %p34, %p35
      %p37 = scmp.ne.s32.totalorder %s26, %s27
      %p38 = scmp.eq.s32.totalorder %s18, 0
      %p39 = por %p37, %p38
      %p40 = scmp.ne.s32.totalorder %s26, %s27
      %p41 = scmp.eq.s32.totalorder %s19, 1
      %p42 = por %p40, %p41
      %p44 = scmp.ne.s32.totalorder %s27, %s43
      %p45 = scmp.eq.s32.totalorder %s19, 0
      %p46 = por %p44, %p45
      %s47 = ssub.s32 %s13, %s20
      %p48 = scmp.eq.s32.totalorder %s47, 0
      %s50 = sadd.s32 %s49, 1
      %s51 = scalar_select %p48, %s49, %s50
      %p54 = pneg %p48
      %p55 = scmp.eq.s32.totalorder %s13, 1
      %p56 = por %p54, %p55
      %p57 = scmp.ne.s32.totalorder %s49, %s52
      %p58 = scmp.eq.s32.totalorder %s13, 0
      %p59 = por %p57, %p58
      %p60 = scmp.ne.s32.totalorder %s49, %s52
      %p61 = scmp.eq.s32.totalorder %s18, 1
      %p62 = por %p60, %p61
      %p63 = scmp.ne.s32.totalorder %s52, %s53
      %p64 = scmp.eq.s32.totalorder %s18, 0
      %p65 = por %p63, %p64
      %p66 = scmp.ne.s32.totalorder %s52, %s53
      %p67 = scmp.eq.s32.totalorder %s19, 1
      %p68 = por %p66, %p67
      %p70 = scmp.ne.s32.totalorder %s53, %s69
      %p71 = scmp.eq.s32.totalorder %s19, 0
      %p72 = por %p70, %p71
      %p73 = scmp.le.s32.totalorder 1, %s13
      %p74 = scmp.lt.s32.totalorder %s13, 3
      %p75 = pnand %p73, %p74
      %p76 = pneg %p75
      // Predicated region
      $region9: #{tpu_custom_call.1} parent=5 // pred_check
        _
      $region10: #{tpu_custom_call.1} parent=5 // pred_check_branch
        %78 = sbr.rel (%p75) target = $region12
      $region11: #{tpu_custom_call.1} parent=5 // pred_region
        %s79 = ssub.s32 %s13, 1
      $region12: #{tpu_custom_call.1} parent=5 // pred_fallthru
        _
      %p80 = scmp.lt.s32.totalorder %s13, 2
      // Predicated region
      $region13: #{tpu_custom_call.1} parent=5 // pred_check
        %p81 = pneg %p80
      $region14: #{tpu_custom_call.1} parent=5 // pred_check_branch
        %83 = sbr.rel (%p81) target = $region16
      $region15: #{tpu_custom_call.1} parent=5 // pred_region
        // Predicated region
        $region17: #{tpu_custom_call.1} parent=15 // pred_check
          %p84 = pneg %p33
        $region18: #{tpu_custom_call.1} parent=15 // pred_check_branch
          %86 = sbr.rel (%p84) target = $region20
        $region19: #{tpu_custom_call.1} parent=15 // pred_region
          %s87 = sand.u32 %s23, 1
          %s88 = scalar_lea.sflag [#allocation3], %s87
          %s89 = sand.u32 %s23, 1
          %s90 = smul.addr %s89, 8
          %s91 = scalar_lea.vmem [#allocation2], %s90
          %s93 = ssub.s32 128, 128
          %94 = vsyncadd %s88, %s93
          %s95 = smul.addr %s13, 128
          %s96 = scalar_lea.hbm %s0, %s95
          %s98 = sshll.u32 %s91, 4
          %s99 = int_to_ptr.vmem [resolvable:$true] %s98
          %101 = dma.hbm_to_vmem [thread:$0]  %s96, 128, %s99, %s88
        $region20: #{tpu_custom_call.1} parent=15 // pred_fallthru
          _
      $region16: #{tpu_custom_call.1} parent=5 // pred_fallthru
        _
      %p102 = scmp.le.s32.totalorder 1, %s13
      %p103 = scmp.lt.s32.totalorder %s13, 3
      %p104 = pnand %p102, %p103
      %p105 = pneg %p104
      // Predicated region
      $region21: #{tpu_custom_call.1} parent=5 // pred_check
        _
      $region22: #{tpu_custom_call.1} parent=5 // pred_check_branch
        %107 = sbr.rel (%p104) target = $region24
      $region23: #{tpu_custom_call.1} parent=5 // pred_region
        %s108 = ssub.s32 %s13, 1
        %s109 = sand.u32 %s26, 1
        %s110 = scalar_lea.sflag [#allocation3], %s109
        %s111 = sand.u32 %s26, 1
        %s112 = smul.addr %s111, 8
        %s113 = scalar_lea.vmem [#allocation2], %s112
        // Predicated region
        $region25: #{tpu_custom_call.1} parent=23 // pred_check
          %p114 = pneg %p39
        $region26: #{tpu_custom_call.1} parent=23 // pred_check_branch
          %116 = sbr.rel (%p114) target = $region28
        $region27: #{tpu_custom_call.1} parent=23 // pred_region
          %117 = dma.done %s110, 128
        $region28: #{tpu_custom_call.1} parent=23 // pred_fallthru
          _
        %s118 = sand.u32 %s26, 1
        %s119 = scalar_lea.sflag [#allocation3], %s118
        %s120 = sand.u32 %s26, 1
        %s121 = smul.addr %s120, 8
        %s122 = scalar_lea.vmem [#allocation2], %s121
        %p123 = pneg %p39
        %p124 = pneg %p36
        %p125 = pneg %p65
        %p126 = pneg %p62
        %s127 = sand.u32 %s52, 1
        %s128 = scalar_lea.sflag [#allocation4], %s127
        %s129 = sand.u32 %s52, 1
        %s130 = smul.addr %s129, 8
        %s131 = scalar_lea.vmem [#allocation5], %s130
        %v132 = vld [vmem:[%s113] sm:$0xff]
        %v133 = vlaneseq
        %v134 = vand.u32 %v133, 127
        %vm135 = vcmp.lt.s32.totalorder %v134, 24
        %v136 = vsel %vm135, %v132, 0.0
        %vm137 = vcmp.ge.s32.totalorder %v134, 8
        %vm138 = vmand %vm137, %vm135
        %139 = vrot.lane.b32.xlu0 %v132, 88
        %v140 = vpop.permute.xlu0 %139
        %141 = vrot.lane.b32.xlu0 %v132, 72
        %v142 = vpop.permute.xlu0 %141
        %v143 = vadd.f32 %v140, %v142
        %v144 = vsel %vm138, %v143, 0.0
        %v145 = vadd.f32 %v136, %v144
        %vm146 = vcmp.ge.s32.totalorder %v134, 32
        %vm147 = vcmp.lt.s32.totalorder %v134, 40
        %vm148 = vmand %vm146, %vm147
        %149 = vrot.lane.b32.xlu0 %v132, 120
        %v150 = vpop.permute.xlu0 %149
        %v151 = vsel %vm148, %v150, 0.0
        %v152 = vadd.f32 %v145, %v151
        %153 = vst [vmem:[%s131] sm:$0xff] %v152
        %s154 = sand.u32 %s52, 1
        %s155 = scalar_lea.sflag [#allocation4], %s154
        %s156 = sand.u32 %s52, 1
        %s157 = smul.addr %s156, 8
        %s158 = scalar_lea.vmem [#allocation5], %s157
        // Predicated region
        $region29: #{tpu_custom_call.1} parent=23 // pred_check
          %p159 = pneg %p62
        $region30: #{tpu_custom_call.1} parent=23 // pred_check_branch
          %161 = sbr.rel (%p159) target = $region32
        $region31: #{tpu_custom_call.1} parent=23 // pred_region
          %s163 = ssub.s32 128, 128
          %164 = vsyncadd %s155, %s163
          %s165 = smul.addr %s18, 128
          %s166 = scalar_lea.hbm %s1, %s165
          %s168 = sshll.u32 %s158, 4
          %s169 = int_to_ptr.vmem [resolvable:$true] %s168
          %171 = dma.vmem_to_hbm [thread:$0]  %s169, 128, %s166, %s155
        $region32: #{tpu_custom_call.1} parent=23 // pred_fallthru
          _
      $region24: #{tpu_custom_call.1} parent=5 // pred_fallthru
        _
      %p172 = scmp.le.s32.totalorder 2, %s13
      // Predicated region
      $region33: #{tpu_custom_call.1} parent=5 // pred_check
        %p173 = pneg %p172
      $region34: #{tpu_custom_call.1} parent=5 // pred_check_branch
        %175 = sbr.rel (%p173) target = $region36
      $region35: #{tpu_custom_call.1} parent=5 // pred_region
        %s176 = ssub.s32 %s13, 2
        // Predicated region
        $region37: #{tpu_custom_call.1} parent=35 // pred_check
          %p177 = pneg %p68
        $region38: #{tpu_custom_call.1} parent=35 // pred_check_branch
          %179 = sbr.rel (%p177) target = $region40
        $region39: #{tpu_custom_call.1} parent=35 // pred_region
          %s180 = sand.u32 %s53, 1
          %s181 = scalar_lea.sflag [#allocation4], %s180
          %s182 = sand.u32 %s53, 1
          %s183 = smul.addr %s182, 8
          %s184 = scalar_lea.vmem [#allocation5], %s183
          %185 = dma.done %s181, 128
        $region40: #{tpu_custom_call.1} parent=35 // pred_fallthru
          _
      $region36: #{tpu_custom_call.1} parent=5 // pred_fallthru
        _
    $region6: #{tpu_custom_call.1} parent=1 // loop_footer
      %s17 = sadd.s32 1, %s13
    $region7: #{tpu_custom_call.1} parent=1 // loop_footer_branch
      %12 = sbr.rel target = $region3
    $region8: #{tpu_custom_call.1} parent=1 // loop_exit
      _
    %186 = vsyncpa [#allocation3], 1
    %s187 = scalar_lea.sflag [#allocation3], 1
    %188 = vsyncpa %s187, 1
    %189 = vsyncpa [#allocation4], 1
    %s190 = scalar_lea.sflag [#allocation4], 1
    %191 = vsyncpa %s190, 1

</llo_original>
